<compile_context>
chip_gen: v5e
topology: v5e:2x2
jax: 0.10.0
libtpu: 0.0.40
codegen_flags: <defaults>
</compile_context>

<pallas_src>
import jax
import jax.numpy as jnp
from jax.experimental import pallas as pl
from jax.experimental.pallas import tpu as pltpu


def _round_up(x, m):
    return (x + m - 1) // m * m


def _cdiv(a, b):
    return (a + b - 1) // b


def _physical_vmem_bytes():
    try:
        return int(pltpu.get_tpu_info().vmem_capacity_bytes)
    except Exception:
        return 64 * 1024 * 1024  # conservative: assume v7x-sized VMEM


def _choose_block_b(B, per_row_bytes, resident_bytes, tile_budget_bytes,
                    target_steps=4):
    """Largest batch tile that fits the VMEM budget and keeps >= target_steps
    grid steps (for pipelining + megacore) when the batch allows it."""
    cands = [512, 256, 128, 64, 32, 16, 8]
    feasible = [c for c in cands
                if resident_bytes + c * per_row_bytes <= tile_budget_bytes]
    if not feasible:
        feasible = [8]
    for c in feasible:                       # >= target_steps grid steps
        if _cdiv(B, c) >= target_steps:
            return c
    for c in feasible:                       # else at least 2 steps (2 TCs)
        if _cdiv(B, c) >= 2:
            return c
    return feasible[-1]                      # tiny batch: single step


def _make_mlp_kernel(num_layers):
    def kernel(x_ref, *refs):
        # refs = (w0, b0, w1, b1, ..., w_{L-1}, b_{L-1}, o_ref)
        o_ref = refs[2 * num_layers]
        h = x_ref[...]                                   # bf16 activations
        for l in range(num_layers):
            w = refs[2 * l][...]                         # (din_pad, dout_pad) bf16
            b = refs[2 * l + 1][...]                     # (1, dout_pad) f32
            acc = jnp.dot(h, w, preferred_element_type=jnp.float32) + b
            act = jnp.maximum(acc, 0.0)                  # f32 epilogue (v5e-safe)
            if l + 1 < num_layers:
                h = act.astype(x_ref.dtype)              # stays in VMEM/vregs
            else:
                o_ref[...] = act.astype(o_ref.dtype)
    return kernel


def _param_block_spec(shape, single_buffer):
    index_map = lambda i: (0, 0)                         # VMEM-resident across grid
    if single_buffer:
        try:
            return pl.BlockSpec(shape, index_map,
                                pipeline_mode=pl.Buffered(buffer_count=1))
        except TypeError:
            pass  # older JAX: no pipeline_mode kwarg -> default buffering
    return pl.BlockSpec(shape, index_map)


def mlp_forward(xb, weights, biases, *, block_b, out_dtype, vmem_limit_bytes,
                single_buffer_params=True):
    """Fused multi-layer (x @ W + b -> ReLU)^L as one Pallas TPU kernel.

    xb:      (B_pad, din_pad) compute-dtype (bf16), B_pad % block_b == 0
    weights: list of (din_pad_l, dout_pad_l) bf16 arrays (zero-padded)
    biases:  list of (1, dout_pad_l) f32 arrays (zero-padded)
    """
    B_pad, din_pad = xb.shape
    num_layers = len(weights)
    dout_pad = weights[-1].shape[1]
    assert B_pad % block_b == 0

    grid = (B_pad // block_b,)

    in_specs = [pl.BlockSpec((block_b, din_pad), lambda i: (i, 0))]
    for w, b in zip(weights, biases):
        in_specs.append(_param_block_spec(w.shape, single_buffer_params))
        in_specs.append(_param_block_spec(b.shape, single_buffer_params))
    out_specs = pl.BlockSpec((block_b, dout_pad), lambda i: (i, 0))

    flops = 2 * B_pad * sum(w.shape[0] * w.shape[1] for w in weights)
    bytes_accessed = (
        xb.size * xb.dtype.itemsize
        + sum(w.size * w.dtype.itemsize for w in weights)
        + sum(b.size * b.dtype.itemsize for b in biases)
        + B_pad * dout_pad * jnp.dtype(out_dtype).itemsize)

    flat_params = [p for wb in zip(weights, biases) for p in wb]

    return pl.pallas_call(
        _make_mlp_kernel(num_layers),
        out_shape=jax.ShapeDtypeStruct((B_pad, dout_pad), out_dtype),
        grid_spec=pltpu.PrefetchScalarGridSpec(
            num_scalar_prefetch=0,
            grid=grid,
            in_specs=in_specs,
            out_specs=out_specs,
        ),
        compiler_params=pltpu.CompilerParams(
            dimension_semantics=("parallel",),   # batch tiles -> megacore
            vmem_limit_bytes=int(vmem_limit_bytes),
        ),
        cost_estimate=pl.CostEstimate(
            flops=flops, transcendentals=0, bytes_accessed=bytes_accessed),
    )(xb, *flat_params)


class DNN:
    """JAX/Pallas port of the PyTorch DNN module (MLP with ReLU).

    Parameters are kept in f32 (matching the PyTorch init) for reference
    checks; zero-padded bf16 copies are prepared once for the fused kernel.
    """

    def __init__(self, inputs_dim, hidden_units, dropout_rate, key,
                 compute_dtype=jnp.bfloat16, out_dtype=jnp.float32):
        self.inputs_dim = inputs_dim
        self.dims = [inputs_dim] + list(hidden_units)
        self.dropout_rate = dropout_rate  # no-op in the reference forward
        self.compute_dtype = compute_dtype
        self.out_dtype = out_dtype

        self.weights, self.biases = [], []
        for i in range(len(self.dims) - 1):
            din, dout = self.dims[i], self.dims[i + 1]
            key, wk, bk = jax.random.split(key, 3)
            # nn.init.normal_(weight, mean=0, std=0.0001); stored as (din, dout)
            w = 0.0001 * jax.random.normal(wk, (din, dout), dtype=jnp.float32)
            # PyTorch Linear default bias init: U(-1/sqrt(din), 1/sqrt(din))
            bound = 1.0 / (din ** 0.5)
            b = jax.random.uniform(bk, (1, dout), dtype=jnp.float32,
                                   minval=-bound, maxval=bound)
            self.weights.append(w)
            self.biases.append(b)

        # Input feature dim: only pad to a multiple of 8 (sublane-friendly);
        # hidden/output dims: pad to 128 so matmul outputs and the final store
        # are lane-dense.  Zero-padded weight rows/cols + zero bias padding
        # keep the math exact.
        self.padded_dims = [_round_up(self.dims[0], 8)] + [
            _round_up(d, 128) for d in self.dims[1:]]
        self.w_pad, self.b_pad = [], []
        for i, (w, b) in enumerate(zip(self.weights, self.biases)):
            dpi, dpo = self.padded_dims[i], self.padded_dims[i + 1]
            wp = jnp.zeros((dpi, dpo), compute_dtype)
            wp = wp.at[: w.shape[0], : w.shape[1]].set(w.astype(compute_dtype))
            bp = jnp.zeros((1, dpo), jnp.float32).at[:, : b.shape[1]].set(b)
            self.w_pad.append(wp)
            self.b_pad.append(bp)

        self._resident_bytes = (
            sum(int(w.size) * w.dtype.itemsize for w in self.w_pad)
            + sum(int(b.size) * b.dtype.itemsize for b in self.b_pad))
        # NOTE: if total resident parameters grow past ~20-24 MiB, v7x's 64 MiB
        # VMEM calls for streaming weights per layer instead of keeping all
        # layers resident (add a layer grid axis / emit_pipeline).

    def __call__(self, x, block_b=None):
        B, Din = x.shape
        assert Din == self.inputs_dim
        din_pad = self.padded_dims[0]
        dout_pad = self.padded_dims[-1]
        dout = self.dims[-1]
        cdt_size = jnp.dtype(self.compute_dtype).itemsize
        out_size = jnp.dtype(self.out_dtype).itemsize
        max_pad = max(self.padded_dims)

        # Per-batch-row VMEM cost: double-buffered bf16 x tile, double-buffered
        # output tile, plus f32 accumulator / bf16 activation temporaries.
        per_row = (2 * din_pad * cdt_size
                   + 2 * dout_pad * out_size
                   + 10 * max_pad)

        physical = _physical_vmem_bytes()
        tile_budget = max(min(physical - (16 << 20), 96 << 20), 16 << 20)
        if block_b is None:
            block_b = _choose_block_b(B, per_row, self._resident_bytes,
                                      tile_budget)

        # Scoped VMEM limit derived from actual usage (2x resident covers the
        # double-buffered fallback), with headroom, capped below physical VMEM.
        need = 2 * self._resident_bytes + block_b * per_row
        vmem_limit = min(max(need + (8 << 20), 32 << 20), physical - (8 << 20))

        B_pad = _round_up(B, block_b)
        # Stream x in bf16; pad batch rows / input features with zeros only if
        # needed (padded rows produce relu(bias) garbage that is sliced off).
        xb = x.astype(self.compute_dtype)
        if (B_pad, din_pad) != (B, Din):
            xb = jnp.pad(xb, ((0, B_pad - B), (0, din_pad - Din)))

        try:
            out_pad = mlp_forward(xb, self.w_pad, self.b_pad, block_b=block_b,
                                  out_dtype=self.out_dtype,
                                  vmem_limit_bytes=vmem_limit,
                                  single_buffer_params=True)
        except Exception:
            # Fallback if this JAX/Mosaic build rejects Buffered(1) params.
            out_pad = mlp_forward(xb, self.w_pad, self.b_pad, block_b=block_b,
                                  out_dtype=self.out_dtype,
                                  vmem_limit_bytes=vmem_limit,
                                  single_buffer_params=False)
        return out_pad[:B, :dout]


def _reference_forward(x, weights, biases):
    out = x
    for w, b in zip(weights, biases):
        out = jnp.maximum(out @ w + b, 0.0)
    return out


if __name__ == "__main__":
    key = jax.random.PRNGKey(0)
    key, xk, mk = jax.random.split(key, 3)

    batch = 256            # -> block_b=64, grid of 4 batch tiles (pipelined)
    inputs_dim = 32
    hidden_units = (64, 32)

    model = DNN(inputs_dim, hidden_units, dropout_rate=0.5, key=mk)
    x = jax.random.normal(xk, (batch, inputs_dim), dtype=jnp.float32)

    out = jax.block_until_ready(model(x))
    ref = _reference_forward(x, model.weights, model.biases)

    assert out.shape == (batch, hidden_units[-1])
    # bf16 activations/weights in the kernel -> loosened tolerance vs f32 ref.
    assert jnp.allclose(out, ref, atol=2e-3, rtol=2e-2), float(
        jnp.max(jnp.abs(out - ref)))
    print("KERNEL_OK")
</pallas_src>

<mosaic_0001>
module attributes {stable_mosaic.version = 11 : i64} {
  func.func @kernel(%arg0: i32, %arg1: memref<64x32xbf16, #tpu.memory_space<vmem>>, %arg2: memref<32x128xbf16, #tpu.memory_space<vmem>>, %arg3: memref<1x128xf32, #tpu.memory_space<vmem>>, %arg4: memref<128x128xbf16, #tpu.memory_space<vmem>>, %arg5: memref<1x128xf32, #tpu.memory_space<vmem>>, %arg6: memref<64x128xf32, #tpu.memory_space<vmem>>) attributes {dimension_semantics = [#tpu.dimension_semantics<parallel>], iteration_bounds = array<i64: 4>, scalar_prefetch = 0 : i64, scratch_operands = 0 : i64, tpu.core_type = #tpu.core_type<tc>, window_params = [{transform_indices = @transform_0, window_bounds = array<i64: 64, 32>}, {pipeline_mode = #tpu.pipeline_mode<synchronous>, transform_indices = @transform_1, window_bounds = array<i64: 32, 128>}, {pipeline_mode = #tpu.pipeline_mode<synchronous>, transform_indices = @transform_2, window_bounds = array<i64: 1, 128>}, {pipeline_mode = #tpu.pipeline_mode<synchronous>, transform_indices = @transform_3, window_bounds = array<i64: 128, 128>}, {pipeline_mode = #tpu.pipeline_mode<synchronous>, transform_indices = @transform_4, window_bounds = array<i64: 1, 128>}, {transform_indices = @transform_5, window_bounds = array<i64: 64, 128>}]} {
    %c0 = arith.constant 0 : index
    %c0_0 = arith.constant 0 : index
    %0 = vector.load %arg1[%c0, %c0_0] : memref<64x32xbf16, #tpu.memory_space<vmem>>, vector<64x32xbf16>
    %c0_1 = arith.constant 0 : index
    %c0_2 = arith.constant 0 : index
    %1 = vector.load %arg2[%c0_1, %c0_2] : memref<32x128xbf16, #tpu.memory_space<vmem>>, vector<32x128xbf16>
    %c0_3 = arith.constant 0 : index
    %c0_4 = arith.constant 0 : index
    %2 = vector.load %arg3[%c0_3, %c0_4] : memref<1x128xf32, #tpu.memory_space<vmem>>, vector<1x128xf32>
    %cst = arith.constant dense<0.000000e+00> : vector<64x128xf32>
    %3 = tpu.matmul %0, %1, %cst {dimension_numbers = #tpu.dot_dimension_numbers<[1], [0], [0], [1], [0, 0, 1, 1], [], []>} : vector<64x32xbf16>, vector<32x128xbf16>, vector<64x128xf32> -> vector<64x128xf32>
    %4 = vector.broadcast %2 : vector<1x128xf32> to vector<64x128xf32>
    %5 = arith.addf %3, %4 : vector<64x128xf32>
    %cst_5 = arith.constant 0.000000e+00 : f32
    %6 = vector.broadcast %cst_5 : f32 to vector<64x128xf32>
    %7 = arith.maximumf %5, %6 : vector<64x128xf32>
    %8 = arith.truncf %7 : vector<64x128xf32> to vector<64x128xbf16>
    %c0_6 = arith.constant 0 : index
    %c0_7 = arith.constant 0 : index
    %9 = vector.load %arg4[%c0_6, %c0_7] : memref<128x128xbf16, #tpu.memory_space<vmem>>, vector<128x128xbf16>
    %c0_8 = arith.constant 0 : index
    %c0_9 = arith.constant 0 : index
    %10 = vector.load %arg5[%c0_8, %c0_9] : memref<1x128xf32, #tpu.memory_space<vmem>>, vector<1x128xf32>
    %cst_10 = arith.constant dense<0.000000e+00> : vector<64x128xf32>
    %11 = tpu.matmul %8, %9, %cst_10 {dimension_numbers = #tpu.dot_dimension_numbers<[1], [0], [0], [1], [0, 0, 1, 1], [], []>} : vector<64x128xbf16>, vector<128x128xbf16>, vector<64x128xf32> -> vector<64x128xf32>
    %12 = vector.broadcast %10 : vector<1x128xf32> to vector<64x128xf32>
    %13 = arith.addf %11, %12 : vector<64x128xf32>
    %cst_11 = arith.constant 0.000000e+00 : f32
    %14 = vector.broadcast %cst_11 : f32 to vector<64x128xf32>
    %15 = arith.maximumf %13, %14 : vector<64x128xf32>
    %c0_12 = arith.constant 0 : index
    %c0_13 = arith.constant 0 : index
    %16 = vector.load %arg6[%c0_12, %c0_13] : memref<64x128xf32, #tpu.memory_space<vmem>>, vector<64x128xf32>
    tpu.vector_store %arg6[%c0_12, %c0_13], %15 {strides = array<i32>} : memref<64x128xf32, #tpu.memory_space<vmem>>, vector<64x128xf32>,
    return
  }
  func.func @transform_0(%arg0: i32) -> (i32, i32) {
    %c0_i32 = arith.constant 0 : i32
    %c0_i32_0 = arith.constant 0 : i32
    return %arg0, %c0_i32 : i32, i32
  }
  func.func @transform_1(%arg0: i32) -> (i32, i32) {
    %c0_i32 = arith.constant 0 : i32
    %c0_i32_0 = arith.constant 0 : i32
    %c0_i32_1 = arith.constant 0 : i32
    return %c0_i32, %c0_i32_0 : i32, i32
  }
  func.func @transform_2(%arg0: i32) -> (i32, i32) {
    %c0_i32 = arith.constant 0 : i32
    %c0_i32_0 = arith.constant 0 : i32
    %c0_i32_1 = arith.constant 0 : i32
    return %c0_i32, %c0_i32_0 : i32, i32
  }
  func.func @transform_3(%arg0: i32) -> (i32, i32) {
    %c0_i32 = arith.constant 0 : i32
    %c0_i32_0 = arith.constant 0 : i32
    %c0_i32_1 = arith.constant 0 : i32
    return %c0_i32, %c0_i32_0 : i32, i32
  }
  func.func @transform_4(%arg0: i32) -> (i32, i32) {
    %c0_i32 = arith.constant 0 : i32
    %c0_i32_0 = arith.constant 0 : i32
    %c0_i32_1 = arith.constant 0 : i32
    return %c0_i32, %c0_i32_0 : i32, i32
  }
  func.func @transform_5(%arg0: i32) -> (i32, i32) {
    %c0_i32 = arith.constant 0 : i32
    %c0_i32_0 = arith.constant 0 : i32
    return %arg0, %c0_i32 : i32, i32
  }
}

module attributes {stable_mosaic.version = 11 : i64} {
  func.func @kernel(%arg0: i32, %arg1: memref<64x32xbf16, #tpu.memory_space<vmem>>, %arg2: memref<32x128xbf16, #tpu.memory_space<vmem>>, %arg3: memref<1x128xf32, #tpu.memory_space<vmem>>, %arg4: memref<128x128xbf16, #tpu.memory_space<vmem>>, %arg5: memref<1x128xf32, #tpu.memory_space<vmem>>, %arg6: memref<64x128xf32, #tpu.memory_space<vmem>>) attributes {dimension_semantics = [#tpu.dimension_semantics<parallel>], iteration_bounds = array<i64: 4>, scalar_prefetch = 0 : i64, scratch_operands = 0 : i64, tpu.core_type = #tpu.core_type<tc>, window_params = [{transform_indices = @transform_0, window_bounds = array<i64: 64, 32>}, {pipeline_mode = #tpu.pipeline_mode<synchronous>, transform_indices = @transform_1, window_bounds = array<i64: 32, 128>}, {pipeline_mode = #tpu.pipeline_mode<synchronous>, transform_indices = @transform_2, window_bounds = array<i64: 1, 128>}, {pipeline_mode = #tpu.pipeline_mode<synchronous>, transform_indices = @transform_3, window_bounds = array<i64: 128, 128>}, {pipeline_mode = #tpu.pipeline_mode<synchronous>, transform_indices = @transform_4, window_bounds = array<i64: 1, 128>}, {transform_indices = @transform_5, window_bounds = array<i64: 64, 128>}]} {
    %c0 = arith.constant 0 : index
    %c0_0 = arith.constant 0 : index
    %0 = vector.load %arg1[%c0, %c0_0] : memref<64x32xbf16, #tpu.memory_space<vmem>>, vector<64x32xbf16>
    %c0_1 = arith.constant 0 : index
    %c0_2 = arith.constant 0 : index
    %1 = vector.load %arg2[%c0_1, %c0_2] : memref<32x128xbf16, #tpu.memory_space<vmem>>, vector<32x128xbf16>
    %c0_3 = arith.constant 0 : index
    %c0_4 = arith.constant 0 : index
    %2 = vector.load %arg3[%c0_3, %c0_4] : memref<1x128xf32, #tpu.memory_space<vmem>>, vector<1x128xf32>
    %cst = arith.constant dense<0.000000e+00> : vector<64x128xf32>
    %3 = tpu.matmul %0, %1, %cst {dimension_numbers = #tpu.dot_dimension_numbers<[1], [0], [0], [1], [0, 0, 1, 1], [], []>} : vector<64x32xbf16>, vector<32x128xbf16>, vector<64x128xf32> -> vector<64x128xf32>
    %4 = vector.broadcast %2 : vector<1x128xf32> to vector<64x128xf32>
    %5 = arith.addf %3, %4 : vector<64x128xf32>
    %cst_5 = arith.constant 0.000000e+00 : f32
    %6 = vector.broadcast %cst_5 : f32 to vector<64x128xf32>
    %7 = arith.maximumf %5, %6 : vector<64x128xf32>
    %8 = arith.truncf %7 : vector<64x128xf32> to vector<64x128xbf16>
    %c0_6 = arith.constant 0 : index
    %c0_7 = arith.constant 0 : index
    %9 = vector.load %arg4[%c0_6, %c0_7] : memref<128x128xbf16, #tpu.memory_space<vmem>>, vector<128x128xbf16>
    %c0_8 = arith.constant 0 : index
    %c0_9 = arith.constant 0 : index
    %10 = vector.load %arg5[%c0_8, %c0_9] : memref<1x128xf32, #tpu.memory_space<vmem>>, vector<1x128xf32>
    %cst_10 = arith.constant dense<0.000000e+00> : vector<64x128xf32>
    %11 = tpu.matmul %8, %9, %cst_10 {dimension_numbers = #tpu.dot_dimension_numbers<[1], [0], [0], [1], [0, 0, 1, 1], [], []>} : vector<64x128xbf16>, vector<128x128xbf16>, vector<64x128xf32> -> vector<64x128xf32>
    %12 = vector.broadcast %10 : vector<1x128xf32> to vector<64x128xf32>
    %13 = arith.addf %11, %12 : vector<64x128xf32>
    %cst_11 = arith.constant 0.000000e+00 : f32
    %14 = vector.broadcast %cst_11 : f32 to vector<64x128xf32>
    %15 = arith.maximumf %13, %14 : vector<64x128xf32>
    %c0_12 = arith.constant 0 : index
    %c0_13 = arith.constant 0 : index
    %16 = vector.load %arg6[%c0_12, %c0_13] : memref<64x128xf32, #tpu.memory_space<vmem>>, vector<64x128xf32>
    tpu.vector_store %arg6[%c0_12, %c0_13], %15 {strides = array<i32>} : memref<64x128xf32, #tpu.memory_space<vmem>>, vector<64x128xf32>,
    return
  }
  func.func @transform_0(%arg0: i32) -> (i32, i32) {
    %c0_i32 = arith.constant 0 : i32
    %c0_i32_0 = arith.constant 0 : i32
    return %arg0, %c0_i32 : i32, i32
  }
  func.func @transform_1(%arg0: i32) -> (i32, i32) {
    %c0_i32 = arith.constant 0 : i32
    %c0_i32_0 = arith.constant 0 : i32
    %c0_i32_1 = arith.constant 0 : i32
    return %c0_i32, %c0_i32_0 : i32, i32
  }
  func.func @transform_2(%arg0: i32) -> (i32, i32) {
    %c0_i32 = arith.constant 0 : i32
    %c0_i32_0 = arith.constant 0 : i32
    %c0_i32_1 = arith.constant 0 : i32
    return %c0_i32, %c0_i32_0 : i32, i32
  }
  func.func @transform_3(%arg0: i32) -> (i32, i32) {
    %c0_i32 = arith.constant 0 : i32
    %c0_i32_0 = arith.constant 0 : i32
    %c0_i32_1 = arith.constant 0 : i32
    return %c0_i32, %c0_i32_0 : i32, i32
  }
  func.func @transform_4(%arg0: i32) -> (i32, i32) {
    %c0_i32 = arith.constant 0 : i32
    %c0_i32_0 = arith.constant 0 : i32
    %c0_i32_1 = arith.constant 0 : i32
    return %c0_i32, %c0_i32_0 : i32, i32
  }
  func.func @transform_5(%arg0: i32) -> (i32, i32) {
    %c0_i32 = arith.constant 0 : i32
    %c0_i32_0 = arith.constant 0 : i32
    return %arg0, %c0_i32 : i32, i32
  }
}

</mosaic_0001>

<llo_original>
// kernel: tpu_custom_call.1
$region0: #{tpu_custom_call.1}
  #allocation0 [shape = 'u32[]', space=smem, size = 0x4, offset = 0x4, fixed_abs, tag = 'smem constant byte address 0x4 - core index']
  #allocation1 [shape = 'u32[72,128]{1,0:T(1,128)}', space=vmem, size = 0x9000, scoped, tag = 'internal scratch']
  %s0 = inlined_call_operand.vmem [shape: bf16[256,32], index: 0, kind: input, shape index: {}]
  %s1 = inlined_call_operand.vmem [shape: bf16[32,128], index: 1, kind: input, shape index: {}]
  %s2 = inlined_call_operand.vmem [shape: f32[1,128], index: 2, kind: input, shape index: {}]
  %s3 = inlined_call_operand.vmem [shape: bf16[128,128], index: 3, kind: input, shape index: {}]
  %s4 = inlined_call_operand.vmem [shape: f32[1,128], index: 4, kind: input, shape index: {}]
  %s5 = inlined_call_operand.hbm [shape: f32[256,128], index: 5, kind: output, shape index: {}]
  %s6 = sld [smem:[#allocation0]]
  $region53: #{tpu_custom_call.1} parent=0
    _
  %s8 = ssub.s32 1, %s6
  %s9 = scalar_select 0, %s8, %s6
  $region1: #{tpu_custom_call.1} parent=0
    #allocation2 [shape = 'u8[65536]{0}', space=vmem, size = 0x10000, scoped, tag = 'output window, operand 0']
    #allocation3 [shape = 's32[2]{0}', space=sflag, size = 0x8, scoped, tag = 'scoped memory for tpu_custom_call.1']
    %10 = vsyncpa [#allocation3], 0
    %s11 = scalar_lea.sflag [#allocation3], 1
    %12 = vsyncpa %s11, 0
    loop: start=0, step=1, limit=6
    $region2: #{tpu_custom_call.1} parent=1 // loop_pre_header
      _
    $region3: #{tpu_custom_call.1} parent=1 // loop_header
      %s14 = sphi 0, %s18
      %p15 = scmp.ge.s32.totalorder %s14, 6
      %s24 = sphi 0, %s26
      %s27 = sphi 0, %s24
      %s28 = sphi 0, %s27
      %s44 = sphi 0, %s28
      %s48 = sphi 0, %s48
      %s50 = sphi 0, %s48
      %s51 = sphi 0, %s50
      %s65 = sphi 0, %s51
      %s69 = sphi 0, %s69
      %s71 = sphi 0, %s69
      %s72 = sphi 0, %s71
      %s86 = sphi 0, %s72
      %s90 = sphi 0, %s90
      %s92 = sphi 0, %s90
      %s93 = sphi 0, %s92
      %s107 = sphi 0, %s93
      %s111 = sphi 0, %s111
      %s113 = sphi 0, %s111
      %s114 = sphi 0, %s113
      %s128 = sphi 0, %s114
      %s134 = sphi 0, %s136
      %s137 = sphi 0, %s134
      %s138 = sphi 0, %s137
      %s154 = sphi 0, %s138
    $region4: #{tpu_custom_call.1} parent=1 // loop_header_branch
      %17 = sbr.rel (%p15) target = $region8
    $region5: #{tpu_custom_call.1} parent=1 // loop_body
      %s19 = ssub.s32 %s14, 1
      %s20 = ssub.s32 %s14, 2
      %s21 = sadd.s32 %s14, 1
      %s22 = ssub.s32 %s14, %s21
      %p23 = scmp.eq.s32.totalorder %s22, 0
      %s25 = sadd.s32 %s24, 1
      %s26 = scalar_select %p23, %s24, %s25
      %p29 = pneg %p23
      %p30 = scmp.eq.s32.totalorder %s14, 3
      %p31 = por %p29, %p30
      %p32 = scmp.ne.s32.totalorder %s24, %s27
      %p33 = scmp.eq.s32.totalorder %s14, 0
      %p34 = por %p32, %p33
      %p35 = scmp.ne.s32.totalorder %s24, %s27
      %p36 = scmp.eq.s32.totalorder %s19, 3
      %p37 = por %p35, %p36
      %p38 = scmp.ne.s32.totalorder %s27, %s28
      %p39 = scmp.eq.s32.totalorder %s19, 0
      %p40 = por %p38, %p39
      %p41 = scmp.ne.s32.totalorder %s27, %s28
      %p42 = scmp.eq.s32.totalorder %s20, 3
      %p43 = por %p41, %p42
      %p45 = scmp.ne.s32.totalorder %s28, %s44
      %p46 = scmp.eq.s32.totalorder %s20, 0
      %p47 = por %p45, %p46
      %s49 = sadd.s32 %s48, 1
      %p52 = scmp.eq.s32.totalorder %s14, 3
      %p53 = scmp.ne.s32.totalorder %s48, %s50
      %p54 = scmp.eq.s32.totalorder %s14, 0
      %p55 = por %p53, %p54
      %p56 = scmp.ne.s32.totalorder %s48, %s50
      %p57 = scmp.eq.s32.totalorder %s19, 3
      %p58 = por %p56, %p57
      %p59 = scmp.ne.s32.totalorder %s50, %s51
      %p60 = scmp.eq.s32.totalorder %s19, 0
      %p61 = por %p59, %p60
      %p62 = scmp.ne.s32.totalorder %s50, %s51
      %p63 = scmp.eq.s32.totalorder %s20, 3
      %p64 = por %p62, %p63
      %p66 = scmp.ne.s32.totalorder %s51, %s65
      %p67 = scmp.eq.s32.totalorder %s20, 0
      %p68 = por %p66, %p67
      %s70 = sadd.s32 %s69, 1
      %p73 = scmp.eq.s32.totalorder %s14, 3
      %p74 = scmp.ne.s32.totalorder %s69, %s71
      %p75 = scmp.eq.s32.totalorder %s14, 0
      %p76 = por %p74, %p75
      %p77 = scmp.ne.s32.totalorder %s69, %s71
      %p78 = scmp.eq.s32.totalorder %s19, 3
      %p79 = por %p77, %p78
      %p80 = scmp.ne.s32.totalorder %s71, %s72
      %p81 = scmp.eq.s32.totalorder %s19, 0
      %p82 = por %p80, %p81
      %p83 = scmp.ne.s32.totalorder %s71, %s72
      %p84 = scmp.eq.s32.totalorder %s20, 3
      %p85 = por %p83, %p84
      %p87 = scmp.ne.s32.totalorder %s72, %s86
      %p88 = scmp.eq.s32.totalorder %s20, 0
      %p89 = por %p87, %p88
      %s91 = sadd.s32 %s90, 1
      %p94 = scmp.eq.s32.totalorder %s14, 3
      %p95 = scmp.ne.s32.totalorder %s90, %s92
      %p96 = scmp.eq.s32.totalorder %s14, 0
      %p97 = por %p95, %p96
      %p98 = scmp.ne.s32.totalorder %s90, %s92
      %p99 = scmp.eq.s32.totalorder %s19, 3
      %p100 = por %p98, %p99
      %p101 = scmp.ne.s32.totalorder %s92, %s93
      %p102 = scmp.eq.s32.totalorder %s19, 0
      %p103 = por %p101, %p102
      %p104 = scmp.ne.s32.totalorder %s92, %s93
      %p105 = scmp.eq.s32.totalorder %s20, 3
      %p106 = por %p104, %p105
      %p108 = scmp.ne.s32.totalorder %s93, %s107
      %p109 = scmp.eq.s32.totalorder %s20, 0
      %p110 = por %p108, %p109
      %s112 = sadd.s32 %s111, 1
      %p115 = scmp.eq.s32.totalorder %s14, 3
      %p116 = scmp.ne.s32.totalorder %s111, %s113
      %p117 = scmp.eq.s32.totalorder %s14, 0
      %p118 = por %p116, %p117
      %p119 = scmp.ne.s32.totalorder %s111, %s113
      %p120 = scmp.eq.s32.totalorder %s19, 3
      %p121 = por %p119, %p120
      %p122 = scmp.ne.s32.totalorder %s113, %s114
      %p123 = scmp.eq.s32.totalorder %s19, 0
      %p124 = por %p122, %p123
      %p125 = scmp.ne.s32.totalorder %s113, %s114
      %p126 = scmp.eq.s32.totalorder %s20, 3
      %p127 = por %p125, %p126
      %p129 = scmp.ne.s32.totalorder %s114, %s128
      %p130 = scmp.eq.s32.totalorder %s20, 0
      %p131 = por %p129, %p130
      %s132 = ssub.s32 %s14, %s21
      %p133 = scmp.eq.s32.totalorder %s132, 0
      %s135 = sadd.s32 %s134, 1
      %s136 = scalar_select %p133, %s134, %s135
      %p139 = pneg %p133
      %p140 = scmp.eq.s32.totalorder %s14, 3
      %p141 = por %p139, %p140
      %p142 = scmp.ne.s32.totalorder %s134, %s137
      %p143 = scmp.eq.s32.totalorder %s14, 0
      %p144 = por %p142, %p143
      %p145 = scmp.ne.s32.totalorder %s134, %s137
      %p146 = scmp.eq.s32.totalorder %s19, 3
      %p147 = por %p145, %p146
      %p148 = scmp.ne.s32.totalorder %s137, %s138
      %p149 = scmp.eq.s32.totalorder %s19, 0
      %p150 = por %p148, %p149
      %p151 = scmp.ne.s32.totalorder %s137, %s138
      %p152 = scmp.eq.s32.totalorder %s20, 3
      %p153 = por %p151, %p152
      %p155 = scmp.ne.s32.totalorder %s138, %s154
      %p156 = scmp.eq.s32.totalorder %s20, 0
      %p157 = por %p155, %p156
      %p158 = scmp.le.s32.totalorder 1, %s14
      %p159 = scmp.lt.s32.totalorder %s14, 5
      %p160 = pnand %p158, %p159
      %p161 = pneg %p160
      // Predicated region
      $region9: #{tpu_custom_call.1} parent=5 // pred_check
        _
      $region10: #{tpu_custom_call.1} parent=5 // pred_check_branch
        %163 = sbr.rel (%p160) target = $region12
      $region11: #{tpu_custom_call.1} parent=5 // pred_region
        %s164 = ssub.s32 %s14, 1
        // Predicated region
        $region13: #{tpu_custom_call.1} parent=11 // pred_check
          %p165 = pneg %p61
        $region14: #{tpu_custom_call.1} parent=11 // pred_check_branch
          %167 = sbr.rel (%p165) target = $region16
        $region15: #{tpu_custom_call.1} parent=11 // pred_region
          _
        $region16: #{tpu_custom_call.1} parent=11 // pred_fallthru
          _
        // Predicated region
        $region17: #{tpu_custom_call.1} parent=11 // pred_check
          %p168 = pneg %p82
        $region18: #{tpu_custom_call.1} parent=11 // pred_check_branch
          %170 = sbr.rel (%p168) target = $region20
        $region19: #{tpu_custom_call.1} parent=11 // pred_region
          _
        $region20: #{tpu_custom_call.1} parent=11 // pred_fallthru
          _
        // Predicated region
        $region21: #{tpu_custom_call.1} parent=11 // pred_check
          %p171 = pneg %p103
        $region22: #{tpu_custom_call.1} parent=11 // pred_check_branch
          %173 = sbr.rel (%p171) target = $region24
        $region23: #{tpu_custom_call.1} parent=11 // pred_region
          _
        $region24: #{tpu_custom_call.1} parent=11 // pred_fallthru
          _
        // Predicated region
        $region25: #{tpu_custom_call.1} parent=11 // pred_check
          %p174 = pneg %p124
        $region26: #{tpu_custom_call.1} parent=11 // pred_check_branch
          %176 = sbr.rel (%p174) target = $region28
        $region27: #{tpu_custom_call.1} parent=11 // pred_region
          _
        $region28: #{tpu_custom_call.1} parent=11 // pred_fallthru
          _
      $region12: #{tpu_custom_call.1} parent=5 // pred_fallthru
        _
      %p177 = scmp.lt.s32.totalorder %s14, 4
      // Predicated region
      $region29: #{tpu_custom_call.1} parent=5 // pred_check
        %p178 = pneg %p177
      $region30: #{tpu_custom_call.1} parent=5 // pred_check_branch
        %180 = sbr.rel (%p178) target = $region32
      $region31: #{tpu_custom_call.1} parent=5 // pred_region
        // Predicated region
        $region33: #{tpu_custom_call.1} parent=31 // pred_check
          %p181 = pneg %p34
        $region34: #{tpu_custom_call.1} parent=31 // pred_check_branch
          %183 = sbr.rel (%p181) target = $region36
        $region35: #{tpu_custom_call.1} parent=31 // pred_region
          %s184 = smul.u32 8, %s14
          %p185 = scmp.lt.s32.totalorder %s184, 31
          %s186 = scalar_select %p185, %s184, 31
          %s187 = smul.addr %s186, 4
          %s188 = scalar_lea.vmem %s0, %s187
          %s189 = smul.u32 8, %s14
        $region36: #{tpu_custom_call.1} parent=31 // pred_fallthru
          _
      $region32: #{tpu_custom_call.1} parent=5 // pred_fallthru
        _
      %p190 = scmp.le.s32.totalorder 1, %s14
      %p191 = scmp.lt.s32.totalorder %s14, 5
      %p192 = pnand %p190, %p191
      %p193 = pneg %p192
      // Predicated region
      $region37: #{tpu_custom_call.1} parent=5 // pred_check
        _
      $region38: #{tpu_custom_call.1} parent=5 // pred_check_branch
        %195 = sbr.rel (%p192) target = $region40
      $region39: #{tpu_custom_call.1} parent=5 // pred_region
        %s196 = ssub.s32 %s14, 1
        %s197 = smul.u32 8, %s19
        %p198 = scmp.lt.s32.totalorder %s197, 31
        %s199 = scalar_select %p198, %s197, 31
        %s200 = smul.addr %s199, 4
        %s201 = scalar_lea.vmem %s0, %s200
        %p202 = pneg %p40
        %p203 = pneg %p37
        %p204 = pneg %p61
        %p205 = pneg %p58
        %p206 = pneg %p82
        %p207 = pneg %p79
        %p208 = pneg %p103
        %p209 = pneg %p100
        %p210 = pneg %p124
        %p211 = pneg %p121
        %p212 = pneg %p150
        %p213 = pneg %p147
        %s214 = sand.u32 %s137, 1
        %s215 = scalar_lea.sflag [#allocation3], %s214
        %s216 = sand.u32 %s137, 1
        %s217 = smul.addr %s216, 64
        %s218 = scalar_lea.vmem [#allocation2], %s217
        %s219 = smul.u32 8, %s19
        %p220 = scmp.lt.s32.totalorder %s219, 31
        %s221 = scalar_select %p220, %s219, 31
        %s222 = smul.addr %s221, 4
        %s223 = scalar_lea.vmem %s0, %s222
        %s224 = smul.u32 8, %s19
        %s225 = smul.u32 8, %s19
        %v227 = vld [vmem:[%s223] sm:$0xf]
        %v228 = vld [vmem:[%s223 + $0x4] sm:$0xf]
        %v229 = vld [vmem:[%s223 + $0x8] sm:$0xf]
        %v230 = vld [vmem:[%s223 + $0xc] sm:$0xf]
        %v231 = vld [vmem:[%s223 + $0x10] sm:$0xf]
        %v232 = vld [vmem:[%s223 + $0x14] sm:$0xf]
        %v233 = vld [vmem:[%s223 + $0x18] sm:$0xf]
        %v234 = vld [vmem:[%s223 + $0x1c] sm:$0xf]
        %v235 = vld [vmem:[%s1] sm:$0xf]
        %v236 = vld [vmem:[%s1 + $0x4] sm:$0xf]
        %v237 = vld [vmem:[%s1 + $0x8] sm:$0xf]
        %v238 = vld [vmem:[%s1 + $0xc] sm:$0xf]
        %v239 = vld [vmem:[%s2] sm:$0x1]
        %v241 = vperm.slane %v239, 0
        %v251 = vunpack.c.l.b16 %v227
        %v252 = vunpack.c.l.b16 %v228
        %v253 = vunpack.c.l.b16 %v229
        %v254 = vunpack.c.l.b16 %v230
        %v255 = vunpack.c.l.b16 %v231
        %v256 = vunpack.c.l.b16 %v232
        %v257 = vunpack.c.l.b16 %v233
        %v258 = vunpack.c.l.b16 %v234
        %v259 = vpack.c.b16 %v252, %v251
        %v260 = vpack.c.b16 %v254, %v253
        %v261 = vpack.c.b16 %v256, %v255
        %v262 = vpack.c.b16 %v258, %v257
        %v267 = vunpack.c.l.b16 %v235
        %v268 = vunpack.c.l.b16 %v236
        %v269 = vunpack.c.l.b16 %v237
        %v270 = vunpack.c.l.b16 %v238
        %v271 = vpack.c.b16 %v268, %v267
        %v272 = vpack.c.b16 %v270, %v269
        %vm275 = vcmask 261120
        %v277 = vsel %vm275, %v259, 0
        %v280 = vsel %vm275, %v260, 0
        %v283 = vsel %vm275, %v261, 0
        %v286 = vsel %vm275, %v262, 0
        %288 = vmatpush.bf16.msra.mxu0 0
        %289 = vmatpush.bf16.msra.mxu0 0
        %290 = vmatpush.bf16.msra.mxu0 0
        %291 = vmatpush.bf16.msra.mxu0 0
        %292 = vmatpush.bf16.msra.mxu0 0
        %293 = vmatpush.bf16.msra.mxu0 0
        %294 = vmatpush.bf16.msra.mxu0 %v272
        %295 = vmatpush.bf16.msra.mxu0 %v271
        %296 = vmatmul.bf16.gmra.mxu0 %v277
        %v297 = vpop.f32.mrf.mxu0
        %v298 = vadd.f32 %v241, %v297
        %v299 = vpop.f32.mrf.mxu0
        %v300 = vadd.f32 %v241, %v299
        %301 = vmatmul.bf16.gmra.mxu0 %v280
        %v302 = vpop.f32.mrf.mxu0
        %v303 = vadd.f32 %v241, %v302
        %v304 = vpop.f32.mrf.mxu0
        %v305 = vadd.f32 %v241, %v304
        %306 = vmatmul.bf16.gmra.mxu0 %v283
        %v307 = vpop.f32.mrf.mxu0
        %v308 = vadd.f32 %v241, %v307
        %v309 = vpop.f32.mrf.mxu0
        %v310 = vadd.f32 %v241, %v309
        %311 = vmatmul.bf16.gmra.mxu0 %v286
        %v312 = vpop.f32.mrf.mxu0
        %v313 = vadd.f32 %v241, %v312
        %v314 = vpop.f32.mrf.mxu0
        %v315 = vadd.f32 %v241, %v314
        %316 = vdwg.mxu0
        %v317 = vmax.f32 %v298, 0.0
        %v318 = vmax.f32 %v300, 0.0
        %v319 = vmax.f32 %v303, 0.0
        %v320 = vmax.f32 %v305, 0.0
        %v321 = vmax.f32 %v308, 0.0
        %v322 = vmax.f32 %v310, 0.0
        %v323 = vmax.f32 %v313, 0.0
        %v324 = vmax.f32 %v315, 0.0
        %v325 = vpack.c.bf16 %v318, %v317
        %v326 = vpack.c.bf16 %v320, %v319
        %v327 = vpack.c.bf16 %v322, %v321
        %v328 = vpack.c.bf16 %v324, %v323
        %v329 = vld [vmem:[%s3] sm:$0xf]
        %v330 = vld [vmem:[%s3 + $0x4] sm:$0xf]
        %v331 = vld [vmem:[%s3 + $0x8] sm:$0xf]
        %v332 = vld [vmem:[%s3 + $0xc] sm:$0xf]
        %v333 = vld [vmem:[%s3 + $0x10] sm:$0xf]
        %v334 = vld [vmem:[%s3 + $0x14] sm:$0xf]
        %v335 = vld [vmem:[%s3 + $0x18] sm:$0xf]
        %v336 = vld [vmem:[%s3 + $0x1c] sm:$0xf]
        %v337 = vld [vmem:[%s3 + $0x20] sm:$0xf]
        %v338 = vld [vmem:[%s3 + $0x24] sm:$0xf]
        %v339 = vld [vmem:[%s3 + $0x28] sm:$0xf]
        %v340 = vld [vmem:[%s3 + $0x2c] sm:$0xf]
        %v341 = vld [vmem:[%s3 + $0x30] sm:$0xf]
        %v342 = vld [vmem:[%s3 + $0x34] sm:$0xf]
        %v343 = vld [vmem:[%s3 + $0x38] sm:$0xf]
        %v344 = vld [vmem:[%s3 + $0x3c] sm:$0xf]
        %v345 = vld [vmem:[%s4] sm:$0x1]
        %v347 = vperm.slane %v345, 0
        %v365 = vunpack.c.l.b16 %v329
        %v366 = vunpack.c.l.b16 %v330
        %v367 = vunpack.c.l.b16 %v331
        %v368 = vunpack.c.l.b16 %v332
        %v369 = vunpack.c.l.b16 %v333
        %v370 = vunpack.c.l.b16 %v334
        %v371 = vunpack.c.l.b16 %v335
        %v372 = vunpack.c.l.b16 %v336
        %v373 = vunpack.c.l.b16 %v337
        %v374 = vunpack.c.l.b16 %v338
        %v375 = vunpack.c.l.b16 %v339
        %v376 = vunpack.c.l.b16 %v340
        %v377 = vunpack.c.l.b16 %v341
        %v378 = vunpack.c.l.b16 %v342
        %v379 = vunpack.c.l.b16 %v343
        %v380 = vunpack.c.l.b16 %v344
        %v381 = vpack.c.b16 %v366, %v365
        %v382 = vpack.c.b16 %v368, %v367
        %v383 = vpack.c.b16 %v370, %v369
        %v384 = vpack.c.b16 %v372, %v371
        %v385 = vpack.c.b16 %v374, %v373
        %v386 = vpack.c.b16 %v376, %v375
        %v387 = vpack.c.b16 %v378, %v377
        %v388 = vpack.c.b16 %v380, %v379
        %397 = vmatpush.bf16.msra.mxu0 %v388
        %398 = vmatpush.bf16.msra.mxu0 %v387
        %399 = vmatpush.bf16.msra.mxu0 %v386
        %400 = vmatpush.bf16.msra.mxu0 %v385
        %401 = vmatpush.bf16.msra.mxu0 %v384
        %402 = vmatpush.bf16.msra.mxu0 %v383
        %403 = vmatpush.bf16.msra.mxu0 %v382
        %404 = vmatpush.bf16.msra.mxu0 %v381
        %405 = vmatmul.bf16.gmra.mxu0 %v325
        %v406 = vpop.f32.mrf.mxu0
        %v407 = vadd.f32 %v347, %v406
        %v408 = vpop.f32.mrf.mxu0
        %v409 = vadd.f32 %v347, %v408
        %410 = vmatmul.bf16.gmra.mxu0 %v326
        %v411 = vpop.f32.mrf.mxu0
        %v412 = vadd.f32 %v347, %v411
        %v413 = vpop.f32.mrf.mxu0
        %v414 = vadd.f32 %v347, %v413
        %415 = vmatmul.bf16.gmra.mxu0 %v327
        %v416 = vpop.f32.mrf.mxu0
        %v417 = vadd.f32 %v347, %v416
        %v418 = vpop.f32.mrf.mxu0
        %v419 = vadd.f32 %v347, %v418
        %420 = vmatmul.bf16.gmra.mxu0 %v328
        %v421 = vpop.f32.mrf.mxu0
        %v422 = vadd.f32 %v347, %v421
        %v423 = vpop.f32.mrf.mxu0
        %v424 = vadd.f32 %v347, %v423
        %425 = vdwg.mxu0
        %v426 = vmax.f32 %v407, 0.0
        %v427 = vmax.f32 %v409, 0.0
        %v428 = vmax.f32 %v412, 0.0
        %v429 = vmax.f32 %v414, 0.0
        %v430 = vmax.f32 %v417, 0.0
        %v431 = vmax.f32 %v419, 0.0
        %v432 = vmax.f32 %v422, 0.0
        %v433 = vmax.f32 %v424, 0.0
        %434 = vst [vmem:[%s218] sm:$0xff] %v426
        %435 = vst [vmem:[%s218 + $0x8] sm:$0xff] %v427
        %436 = vst [vmem:[%s218 + $0x10] sm:$0xff] %v428
        %437 = vst [vmem:[%s218 + $0x18] sm:$0xff] %v429
        %438 = vst [vmem:[%s218 + $0x20] sm:$0xff] %v430
        %439 = vst [vmem:[%s218 + $0x28] sm:$0xff] %v431
        %440 = vst [vmem:[%s218 + $0x30] sm:$0xff] %v432
        %441 = vst [vmem:[%s218 + $0x38] sm:$0xff] %v433
        %s442 = sand.u32 %s137, 1
        %s443 = scalar_lea.sflag [#allocation3], %s442
        %s444 = sand.u32 %s137, 1
        %s445 = smul.addr %s444, 64
        %s446 = scalar_lea.vmem [#allocation2], %s445
        // Predicated region
        $region41: #{tpu_custom_call.1} parent=39 // pred_check
          %p447 = pneg %p147
        $region42: #{tpu_custom_call.1} parent=39 // pred_check_branch
          %449 = sbr.rel (%p447) target = $region44
        $region43: #{tpu_custom_call.1} parent=39 // pred_region
          %s450 = smul.u32 8, %s19
          %452 = vsyncadd %s443, 0
          %s453 = smul.addr %s450, 8
          %s454 = scalar_lea.hbm %s5, %s453
          %s455 = sshll.u32 %s446, 4
          %s456 = int_to_ptr.vmem [resolvable:$true] %s455
          %s457 = sshll.u32 %s454, 4
          %s458 = int_to_ptr.hbm [resolvable:$true] %s457
          %463 = dma.vmem_to_hbm [thread:$0]  %s456, 1024, %s458, %s443, 128, 128, 8
        $region44: #{tpu_custom_call.1} parent=39 // pred_fallthru
          _
      $region40: #{tpu_custom_call.1} parent=5 // pred_fallthru
        _
      %p464 = scmp.le.s32.totalorder 2, %s14
      // Predicated region
      $region45: #{tpu_custom_call.1} parent=5 // pred_check
        %p465 = pneg %p464
      $region46: #{tpu_custom_call.1} parent=5 // pred_check_branch
        %467 = sbr.rel (%p465) target = $region48
      $region47: #{tpu_custom_call.1} parent=5 // pred_region
        %s468 = ssub.s32 %s14, 2
        // Predicated region
        $region49: #{tpu_custom_call.1} parent=47 // pred_check
          %p469 = pneg %p153
        $region50: #{tpu_custom_call.1} parent=47 // pred_check_branch
          %471 = sbr.rel (%p469) target = $region52
        $region51: #{tpu_custom_call.1} parent=47 // pred_region
          %s472 = sand.u32 %s138, 1
          %s473 = scalar_lea.sflag [#allocation3], %s472
          %s474 = sand.u32 %s138, 1
          %s475 = smul.addr %s474, 64
          %s476 = scalar_lea.vmem [#allocation2], %s475
          %478 = dma.done %s473, 1024
        $region52: #{tpu_custom_call.1} parent=47 // pred_fallthru
          _
      $region48: #{tpu_custom_call.1} parent=5 // pred_fallthru
        _
    $region6: #{tpu_custom_call.1} parent=1 // loop_footer
      %s18 = sadd.s32 1, %s14
    $region7: #{tpu_custom_call.1} parent=1 // loop_footer_branch
      %13 = sbr.rel target = $region3
    $region8: #{tpu_custom_call.1} parent=1 // loop_exit
      _
    %479 = vsyncpa [#allocation3], 1
    %s480 = scalar_lea.sflag [#allocation3], 1
    %481 = vsyncpa %s480, 1

// kernel: tpu_custom_call.1
$region0: #{tpu_custom_call.1}
  #allocation0 [shape = 'u32[]', space=smem, size = 0x4, offset = 0x4, fixed_abs, tag = 'smem constant byte address 0x4 - core index']
  #allocation1 [shape = 'u32[72,128]{1,0:T(1,128)}', space=vmem, size = 0x9000, scoped, tag = 'internal scratch']
  %s0 = inlined_call_operand.vmem [shape: bf16[256,32], index: 0, kind: input, shape index: {}]
  %s1 = inlined_call_operand.vmem [shape: bf16[32,128], index: 1, kind: input, shape index: {}]
  %s2 = inlined_call_operand.vmem [shape: f32[1,128], index: 2, kind: input, shape index: {}]
  %s3 = inlined_call_operand.vmem [shape: bf16[128,128], index: 3, kind: input, shape index: {}]
  %s4 = inlined_call_operand.vmem [shape: f32[1,128], index: 4, kind: input, shape index: {}]
  %s5 = inlined_call_operand.hbm [shape: f32[256,128], index: 5, kind: output, shape index: {}]
  %s6 = sld [smem:[#allocation0]]
  $region53: #{tpu_custom_call.1} parent=0
    _
  %s8 = ssub.s32 1, %s6
  %s9 = scalar_select 0, %s8, %s6
  $region1: #{tpu_custom_call.1} parent=0
    #allocation2 [shape = 'u8[65536]{0}', space=vmem, size = 0x10000, scoped, tag = 'output window, operand 0']
    #allocation3 [shape = 's32[2]{0}', space=sflag, size = 0x8, scoped, tag = 'scoped memory for tpu_custom_call.1']
    %10 = vsyncpa [#allocation3], 0
    %s11 = scalar_lea.sflag [#allocation3], 1
    %12 = vsyncpa %s11, 0
    loop: start=0, step=1, limit=6
    $region2: #{tpu_custom_call.1} parent=1 // loop_pre_header
      _
    $region3: #{tpu_custom_call.1} parent=1 // loop_header
      %s14 = sphi 0, %s18
      %p15 = scmp.ge.s32.totalorder %s14, 6
      %s24 = sphi 0, %s26
      %s27 = sphi 0, %s24
      %s28 = sphi 0, %s27
      %s44 = sphi 0, %s28
      %s48 = sphi 0, %s48
      %s50 = sphi 0, %s48
      %s51 = sphi 0, %s50
      %s65 = sphi 0, %s51
      %s69 = sphi 0, %s69
      %s71 = sphi 0, %s69
      %s72 = sphi 0, %s71
      %s86 = sphi 0, %s72
      %s90 = sphi 0, %s90
      %s92 = sphi 0, %s90
      %s93 = sphi 0, %s92
      %s107 = sphi 0, %s93
      %s111 = sphi 0, %s111
      %s113 = sphi 0, %s111
      %s114 = sphi 0, %s113
      %s128 = sphi 0, %s114
      %s134 = sphi 0, %s136
      %s137 = sphi 0, %s134
      %s138 = sphi 0, %s137
      %s154 = sphi 0, %s138
    $region4: #{tpu_custom_call.1} parent=1 // loop_header_branch
      %17 = sbr.rel (%p15) target = $region8
    $region5: #{tpu_custom_call.1} parent=1 // loop_body
      %s19 = ssub.s32 %s14, 1
      %s20 = ssub.s32 %s14, 2
      %s21 = sadd.s32 %s14, 1
      %s22 = ssub.s32 %s14, %s21
      %p23 = scmp.eq.s32.totalorder %s22, 0
      %s25 = sadd.s32 %s24, 1
      %s26 = scalar_select %p23, %s24, %s25
      %p29 = pneg %p23
      %p30 = scmp.eq.s32.totalorder %s14, 3
      %p31 = por %p29, %p30
      %p32 = scmp.ne.s32.totalorder %s24, %s27
      %p33 = scmp.eq.s32.totalorder %s14, 0
      %p34 = por %p32, %p33
      %p35 = scmp.ne.s32.totalorder %s24, %s27
      %p36 = scmp.eq.s32.totalorder %s19, 3
      %p37 = por %p35, %p36
      %p38 = scmp.ne.s32.totalorder %s27, %s28
      %p39 = scmp.eq.s32.totalorder %s19, 0
      %p40 = por %p38, %p39
      %p41 = scmp.ne.s32.totalorder %s27, %s28
      %p42 = scmp.eq.s32.totalorder %s20, 3
      %p43 = por %p41, %p42
      %p45 = scmp.ne.s32.totalorder %s28, %s44
      %p46 = scmp.eq.s32.totalorder %s20, 0
      %p47 = por %p45, %p46
      %s49 = sadd.s32 %s48, 1
      %p52 = scmp.eq.s32.totalorder %s14, 3
      %p53 = scmp.ne.s32.totalorder %s48, %s50
      %p54 = scmp.eq.s32.totalorder %s14, 0
      %p55 = por %p53, %p54
      %p56 = scmp.ne.s32.totalorder %s48, %s50
      %p57 = scmp.eq.s32.totalorder %s19, 3
      %p58 = por %p56, %p57
      %p59 = scmp.ne.s32.totalorder %s50, %s51
      %p60 = scmp.eq.s32.totalorder %s19, 0
      %p61 = por %p59, %p60
      %p62 = scmp.ne.s32.totalorder %s50, %s51
      %p63 = scmp.eq.s32.totalorder %s20, 3
      %p64 = por %p62, %p63
      %p66 = scmp.ne.s32.totalorder %s51, %s65
      %p67 = scmp.eq.s32.totalorder %s20, 0
      %p68 = por %p66, %p67
      %s70 = sadd.s32 %s69, 1
      %p73 = scmp.eq.s32.totalorder %s14, 3
      %p74 = scmp.ne.s32.totalorder %s69, %s71
      %p75 = scmp.eq.s32.totalorder %s14, 0
      %p76 = por %p74, %p75
      %p77 = scmp.ne.s32.totalorder %s69, %s71
      %p78 = scmp.eq.s32.totalorder %s19, 3
      %p79 = por %p77, %p78
      %p80 = scmp.ne.s32.totalorder %s71, %s72
      %p81 = scmp.eq.s32.totalorder %s19, 0
      %p82 = por %p80, %p81
      %p83 = scmp.ne.s32.totalorder %s71, %s72
      %p84 = scmp.eq.s32.totalorder %s20, 3
      %p85 = por %p83, %p84
      %p87 = scmp.ne.s32.totalorder %s72, %s86
      %p88 = scmp.eq.s32.totalorder %s20, 0
      %p89 = por %p87, %p88
      %s91 = sadd.s32 %s90, 1
      %p94 = scmp.eq.s32.totalorder %s14, 3
      %p95 = scmp.ne.s32.totalorder %s90, %s92
      %p96 = scmp.eq.s32.totalorder %s14, 0
      %p97 = por %p95, %p96
      %p98 = scmp.ne.s32.totalorder %s90, %s92
      %p99 = scmp.eq.s32.totalorder %s19, 3
      %p100 = por %p98, %p99
      %p101 = scmp.ne.s32.totalorder %s92, %s93
      %p102 = scmp.eq.s32.totalorder %s19, 0
      %p103 = por %p101, %p102
      %p104 = scmp.ne.s32.totalorder %s92, %s93
      %p105 = scmp.eq.s32.totalorder %s20, 3
      %p106 = por %p104, %p105
      %p108 = scmp.ne.s32.totalorder %s93, %s107
      %p109 = scmp.eq.s32.totalorder %s20, 0
      %p110 = por %p108, %p109
      %s112 = sadd.s32 %s111, 1
      %p115 = scmp.eq.s32.totalorder %s14, 3
      %p116 = scmp.ne.s32.totalorder %s111, %s113
      %p117 = scmp.eq.s32.totalorder %s14, 0
      %p118 = por %p116, %p117
      %p119 = scmp.ne.s32.totalorder %s111, %s113
      %p120 = scmp.eq.s32.totalorder %s19, 3
      %p121 = por %p119, %p120
      %p122 = scmp.ne.s32.totalorder %s113, %s114
      %p123 = scmp.eq.s32.totalorder %s19, 0
      %p124 = por %p122, %p123
      %p125 = scmp.ne.s32.totalorder %s113, %s114
      %p126 = scmp.eq.s32.totalorder %s20, 3
      %p127 = por %p125, %p126
      %p129 = scmp.ne.s32.totalorder %s114, %s128
      %p130 = scmp.eq.s32.totalorder %s20, 0
      %p131 = por %p129, %p130
      %s132 = ssub.s32 %s14, %s21
      %p133 = scmp.eq.s32.totalorder %s132, 0
      %s135 = sadd.s32 %s134, 1
      %s136 = scalar_select %p133, %s134, %s135
      %p139 = pneg %p133
      %p140 = scmp.eq.s32.totalorder %s14, 3
      %p141 = por %p139, %p140
      %p142 = scmp.ne.s32.totalorder %s134, %s137
      %p143 = scmp.eq.s32.totalorder %s14, 0
      %p144 = por %p142, %p143
      %p145 = scmp.ne.s32.totalorder %s134, %s137
      %p146 = scmp.eq.s32.totalorder %s19, 3
      %p147 = por %p145, %p146
      %p148 = scmp.ne.s32.totalorder %s137, %s138
      %p149 = scmp.eq.s32.totalorder %s19, 0
      %p150 = por %p148, %p149
      %p151 = scmp.ne.s32.totalorder %s137, %s138
      %p152 = scmp.eq.s32.totalorder %s20, 3
      %p153 = por %p151, %p152
      %p155 = scmp.ne.s32.totalorder %s138, %s154
      %p156 = scmp.eq.s32.totalorder %s20, 0
      %p157 = por %p155, %p156
      %p158 = scmp.le.s32.totalorder 1, %s14
      %p159 = scmp.lt.s32.totalorder %s14, 5
      %p160 = pnand %p158, %p159
      %p161 = pneg %p160
      // Predicated region
      $region9: #{tpu_custom_call.1} parent=5 // pred_check
        _
      $region10: #{tpu_custom_call.1} parent=5 // pred_check_branch
        %163 = sbr.rel (%p160) target = $region12
      $region11: #{tpu_custom_call.1} parent=5 // pred_region
        %s164 = ssub.s32 %s14, 1
        // Predicated region
        $region13: #{tpu_custom_call.1} parent=11 // pred_check
          %p165 = pneg %p61
        $region14: #{tpu_custom_call.1} parent=11 // pred_check_branch
          %167 = sbr.rel (%p165) target = $region16
        $region15: #{tpu_custom_call.1} parent=11 // pred_region
          _
        $region16: #{tpu_custom_call.1} parent=11 // pred_fallthru
          _
        // Predicated region
        $region17: #{tpu_custom_call.1} parent=11 // pred_check
          %p168 = pneg %p82
        $region18: #{tpu_custom_call.1} parent=11 // pred_check_branch
          %170 = sbr.rel (%p168) target = $region20
        $region19: #{tpu_custom_call.1} parent=11 // pred_region
          _
        $region20: #{tpu_custom_call.1} parent=11 // pred_fallthru
          _
        // Predicated region
        $region21: #{tpu_custom_call.1} parent=11 // pred_check
          %p171 = pneg %p103
        $region22: #{tpu_custom_call.1} parent=11 // pred_check_branch
          %173 = sbr.rel (%p171) target = $region24
        $region23: #{tpu_custom_call.1} parent=11 // pred_region
          _
        $region24: #{tpu_custom_call.1} parent=11 // pred_fallthru
          _
        // Predicated region
        $region25: #{tpu_custom_call.1} parent=11 // pred_check
          %p174 = pneg %p124
        $region26: #{tpu_custom_call.1} parent=11 // pred_check_branch
          %176 = sbr.rel (%p174) target = $region28
        $region27: #{tpu_custom_call.1} parent=11 // pred_region
          _
        $region28: #{tpu_custom_call.1} parent=11 // pred_fallthru
          _
      $region12: #{tpu_custom_call.1} parent=5 // pred_fallthru
        _
      %p177 = scmp.lt.s32.totalorder %s14, 4
      // Predicated region
      $region29: #{tpu_custom_call.1} parent=5 // pred_check
        %p178 = pneg %p177
      $region30: #{tpu_custom_call.1} parent=5 // pred_check_branch
        %180 = sbr.rel (%p178) target = $region32
      $region31: #{tpu_custom_call.1} parent=5 // pred_region
        // Predicated region
        $region33: #{tpu_custom_call.1} parent=31 // pred_check
          %p181 = pneg %p34
        $region34: #{tpu_custom_call.1} parent=31 // pred_check_branch
          %183 = sbr.rel (%p181) target = $region36
        $region35: #{tpu_custom_call.1} parent=31 // pred_region
          %s184 = smul.u32 8, %s14
          %p185 = scmp.lt.s32.totalorder %s184, 31
          %s186 = scalar_select %p185, %s184, 31
          %s187 = smul.addr %s186, 4
          %s188 = scalar_lea.vmem %s0, %s187
          %s189 = smul.u32 8, %s14
        $region36: #{tpu_custom_call.1} parent=31 // pred_fallthru
          _
      $region32: #{tpu_custom_call.1} parent=5 // pred_fallthru
        _
      %p190 = scmp.le.s32.totalorder 1, %s14
      %p191 = scmp.lt.s32.totalorder %s14, 5
      %p192 = pnand %p190, %p191
      %p193 = pneg %p192
      // Predicated region
      $region37: #{tpu_custom_call.1} parent=5 // pred_check
        _
      $region38: #{tpu_custom_call.1} parent=5 // pred_check_branch
        %195 = sbr.rel (%p192) target = $region40
      $region39: #{tpu_custom_call.1} parent=5 // pred_region
        %s196 = ssub.s32 %s14, 1
        %s197 = smul.u32 8, %s19
        %p198 = scmp.lt.s32.totalorder %s197, 31
        %s199 = scalar_select %p198, %s197, 31
        %s200 = smul.addr %s199, 4
        %s201 = scalar_lea.vmem %s0, %s200
        %p202 = pneg %p40
        %p203 = pneg %p37
        %p204 = pneg %p61
        %p205 = pneg %p58
        %p206 = pneg %p82
        %p207 = pneg %p79
        %p208 = pneg %p103
        %p209 = pneg %p100
        %p210 = pneg %p124
        %p211 = pneg %p121
        %p212 = pneg %p150
        %p213 = pneg %p147
        %s214 = sand.u32 %s137, 1
        %s215 = scalar_lea.sflag [#allocation3], %s214
        %s216 = sand.u32 %s137, 1
        %s217 = smul.addr %s216, 64
        %s218 = scalar_lea.vmem [#allocation2], %s217
        %s219 = smul.u32 8, %s19
        %p220 = scmp.lt.s32.totalorder %s219, 31
        %s221 = scalar_select %p220, %s219, 31
        %s222 = smul.addr %s221, 4
        %s223 = scalar_lea.vmem %s0, %s222
        %s224 = smul.u32 8, %s19
        %s225 = smul.u32 8, %s19
        %v227 = vld [vmem:[%s223] sm:$0xf]
        %v228 = vld [vmem:[%s223 + $0x4] sm:$0xf]
        %v229 = vld [vmem:[%s223 + $0x8] sm:$0xf]
        %v230 = vld [vmem:[%s223 + $0xc] sm:$0xf]
        %v231 = vld [vmem:[%s223 + $0x10] sm:$0xf]
        %v232 = vld [vmem:[%s223 + $0x14] sm:$0xf]
        %v233 = vld [vmem:[%s223 + $0x18] sm:$0xf]
        %v234 = vld [vmem:[%s223 + $0x1c] sm:$0xf]
        %v235 = vld [vmem:[%s1] sm:$0xf]
        %v236 = vld [vmem:[%s1 + $0x4] sm:$0xf]
        %v237 = vld [vmem:[%s1 + $0x8] sm:$0xf]
        %v238 = vld [vmem:[%s1 + $0xc] sm:$0xf]
        %v239 = vld [vmem:[%s2] sm:$0x1]
        %v241 = vperm.slane %v239, 0
        %v251 = vunpack.c.l.b16 %v227
        %v252 = vunpack.c.l.b16 %v228
        %v253 = vunpack.c.l.b16 %v229
        %v254 = vunpack.c.l.b16 %v230
        %v255 = vunpack.c.l.b16 %v231
        %v256 = vunpack.c.l.b16 %v232
        %v257 = vunpack.c.l.b16 %v233
        %v258 = vunpack.c.l.b16 %v234
        %v259 = vpack.c.b16 %v252, %v251
        %v260 = vpack.c.b16 %v254, %v253
        %v261 = vpack.c.b16 %v256, %v255
        %v262 = vpack.c.b16 %v258, %v257
        %v267 = vunpack.c.l.b16 %v235
        %v268 = vunpack.c.l.b16 %v236
        %v269 = vunpack.c.l.b16 %v237
        %v270 = vunpack.c.l.b16 %v238
        %v271 = vpack.c.b16 %v268, %v267
        %v272 = vpack.c.b16 %v270, %v269
        %vm275 = vcmask 261120
        %v277 = vsel %vm275, %v259, 0
        %v280 = vsel %vm275, %v260, 0
        %v283 = vsel %vm275, %v261, 0
        %v286 = vsel %vm275, %v262, 0
        %288 = vmatpush.bf16.msra.mxu0 0
        %289 = vmatpush.bf16.msra.mxu0 0
        %290 = vmatpush.bf16.msra.mxu0 0
        %291 = vmatpush.bf16.msra.mxu0 0
        %292 = vmatpush.bf16.msra.mxu0 0
        %293 = vmatpush.bf16.msra.mxu0 0
        %294 = vmatpush.bf16.msra.mxu0 %v272
        %295 = vmatpush.bf16.msra.mxu0 %v271
        %296 = vmatmul.bf16.gmra.mxu0 %v277
        %v297 = vpop.f32.mrf.mxu0
        %v298 = vadd.f32 %v241, %v297
        %v299 = vpop.f32.mrf.mxu0
        %v300 = vadd.f32 %v241, %v299
        %301 = vmatmul.bf16.gmra.mxu0 %v280
        %v302 = vpop.f32.mrf.mxu0
        %v303 = vadd.f32 %v241, %v302
        %v304 = vpop.f32.mrf.mxu0
        %v305 = vadd.f32 %v241, %v304
        %306 = vmatmul.bf16.gmra.mxu0 %v283
        %v307 = vpop.f32.mrf.mxu0
        %v308 = vadd.f32 %v241, %v307
        %v309 = vpop.f32.mrf.mxu0
        %v310 = vadd.f32 %v241, %v309
        %311 = vmatmul.bf16.gmra.mxu0 %v286
        %v312 = vpop.f32.mrf.mxu0
        %v313 = vadd.f32 %v241, %v312
        %v314 = vpop.f32.mrf.mxu0
        %v315 = vadd.f32 %v241, %v314
        %316 = vdwg.mxu0
        %v317 = vmax.f32 %v298, 0.0
        %v318 = vmax.f32 %v300, 0.0
        %v319 = vmax.f32 %v303, 0.0
        %v320 = vmax.f32 %v305, 0.0
        %v321 = vmax.f32 %v308, 0.0
        %v322 = vmax.f32 %v310, 0.0
        %v323 = vmax.f32 %v313, 0.0
        %v324 = vmax.f32 %v315, 0.0
        %v325 = vpack.c.bf16 %v318, %v317
        %v326 = vpack.c.bf16 %v320, %v319
        %v327 = vpack.c.bf16 %v322, %v321
        %v328 = vpack.c.bf16 %v324, %v323
        %v329 = vld [vmem:[%s3] sm:$0xf]
        %v330 = vld [vmem:[%s3 + $0x4] sm:$0xf]
        %v331 = vld [vmem:[%s3 + $0x8] sm:$0xf]
        %v332 = vld [vmem:[%s3 + $0xc] sm:$0xf]
        %v333 = vld [vmem:[%s3 + $0x10] sm:$0xf]
        %v334 = vld [vmem:[%s3 + $0x14] sm:$0xf]
        %v335 = vld [vmem:[%s3 + $0x18] sm:$0xf]
        %v336 = vld [vmem:[%s3 + $0x1c] sm:$0xf]
        %v337 = vld [vmem:[%s3 + $0x20] sm:$0xf]
        %v338 = vld [vmem:[%s3 + $0x24] sm:$0xf]
        %v339 = vld [vmem:[%s3 + $0x28] sm:$0xf]
        %v340 = vld [vmem:[%s3 + $0x2c] sm:$0xf]
        %v341 = vld [vmem:[%s3 + $0x30] sm:$0xf]
        %v342 = vld [vmem:[%s3 + $0x34] sm:$0xf]
        %v343 = vld [vmem:[%s3 + $0x38] sm:$0xf]
        %v344 = vld [vmem:[%s3 + $0x3c] sm:$0xf]
        %v345 = vld [vmem:[%s4] sm:$0x1]
        %v347 = vperm.slane %v345, 0
        %v365 = vunpack.c.l.b16 %v329
        %v366 = vunpack.c.l.b16 %v330
        %v367 = vunpack.c.l.b16 %v331
        %v368 = vunpack.c.l.b16 %v332
        %v369 = vunpack.c.l.b16 %v333
        %v370 = vunpack.c.l.b16 %v334
        %v371 = vunpack.c.l.b16 %v335
        %v372 = vunpack.c.l.b16 %v336
        %v373 = vunpack.c.l.b16 %v337
        %v374 = vunpack.c.l.b16 %v338
        %v375 = vunpack.c.l.b16 %v339
        %v376 = vunpack.c.l.b16 %v340
        %v377 = vunpack.c.l.b16 %v341
        %v378 = vunpack.c.l.b16 %v342
        %v379 = vunpack.c.l.b16 %v343
        %v380 = vunpack.c.l.b16 %v344
        %v381 = vpack.c.b16 %v366, %v365
        %v382 = vpack.c.b16 %v368, %v367
        %v383 = vpack.c.b16 %v370, %v369
        %v384 = vpack.c.b16 %v372, %v371
        %v385 = vpack.c.b16 %v374, %v373
        %v386 = vpack.c.b16 %v376, %v375
        %v387 = vpack.c.b16 %v378, %v377
        %v388 = vpack.c.b16 %v380, %v379
        %397 = vmatpush.bf16.msra.mxu0 %v388
        %398 = vmatpush.bf16.msra.mxu0 %v387
        %399 = vmatpush.bf16.msra.mxu0 %v386
        %400 = vmatpush.bf16.msra.mxu0 %v385
        %401 = vmatpush.bf16.msra.mxu0 %v384
        %402 = vmatpush.bf16.msra.mxu0 %v383
        %403 = vmatpush.bf16.msra.mxu0 %v382
        %404 = vmatpush.bf16.msra.mxu0 %v381
        %405 = vmatmul.bf16.gmra.mxu0 %v325
        %v406 = vpop.f32.mrf.mxu0
        %v407 = vadd.f32 %v347, %v406
        %v408 = vpop.f32.mrf.mxu0
        %v409 = vadd.f32 %v347, %v408
        %410 = vmatmul.bf16.gmra.mxu0 %v326
        %v411 = vpop.f32.mrf.mxu0
        %v412 = vadd.f32 %v347, %v411
        %v413 = vpop.f32.mrf.mxu0
        %v414 = vadd.f32 %v347, %v413
        %415 = vmatmul.bf16.gmra.mxu0 %v327
        %v416 = vpop.f32.mrf.mxu0
        %v417 = vadd.f32 %v347, %v416
        %v418 = vpop.f32.mrf.mxu0
        %v419 = vadd.f32 %v347, %v418
        %420 = vmatmul.bf16.gmra.mxu0 %v328
        %v421 = vpop.f32.mrf.mxu0
        %v422 = vadd.f32 %v347, %v421
        %v423 = vpop.f32.mrf.mxu0
        %v424 = vadd.f32 %v347, %v423
        %425 = vdwg.mxu0
        %v426 = vmax.f32 %v407, 0.0
        %v427 = vmax.f32 %v409, 0.0
        %v428 = vmax.f32 %v412, 0.0
        %v429 = vmax.f32 %v414, 0.0
        %v430 = vmax.f32 %v417, 0.0
        %v431 = vmax.f32 %v419, 0.0
        %v432 = vmax.f32 %v422, 0.0
        %v433 = vmax.f32 %v424, 0.0
        %434 = vst [vmem:[%s218] sm:$0xff] %v426
        %435 = vst [vmem:[%s218 + $0x8] sm:$0xff] %v427
        %436 = vst [vmem:[%s218 + $0x10] sm:$0xff] %v428
        %437 = vst [vmem:[%s218 + $0x18] sm:$0xff] %v429
        %438 = vst [vmem:[%s218 + $0x20] sm:$0xff] %v430
        %439 = vst [vmem:[%s218 + $0x28] sm:$0xff] %v431
        %440 = vst [vmem:[%s218 + $0x30] sm:$0xff] %v432
        %441 = vst [vmem:[%s218 + $0x38] sm:$0xff] %v433
        %s442 = sand.u32 %s137, 1
        %s443 = scalar_lea.sflag [#allocation3], %s442
        %s444 = sand.u32 %s137, 1
        %s445 = smul.addr %s444, 64
        %s446 = scalar_lea.vmem [#allocation2], %s445
        // Predicated region
        $region41: #{tpu_custom_call.1} parent=39 // pred_check
          %p447 = pneg %p147
        $region42: #{tpu_custom_call.1} parent=39 // pred_check_branch
          %449 = sbr.rel (%p447) target = $region44
        $region43: #{tpu_custom_call.1} parent=39 // pred_region
          %s450 = smul.u32 8, %s19
          %452 = vsyncadd %s443, 0
          %s453 = smul.addr %s450, 8
          %s454 = scalar_lea.hbm %s5, %s453
          %s455 = sshll.u32 %s446, 4
          %s456 = int_to_ptr.vmem [resolvable:$true] %s455
          %s457 = sshll.u32 %s454, 4
          %s458 = int_to_ptr.hbm [resolvable:$true] %s457
          %463 = dma.vmem_to_hbm [thread:$0]  %s456, 1024, %s458, %s443, 128, 128, 8
        $region44: #{tpu_custom_call.1} parent=39 // pred_fallthru
          _
      $region40: #{tpu_custom_call.1} parent=5 // pred_fallthru
        _
      %p464 = scmp.le.s32.totalorder 2, %s14
      // Predicated region
      $region45: #{tpu_custom_call.1} parent=5 // pred_check
        %p465 = pneg %p464
      $region46: #{tpu_custom_call.1} parent=5 // pred_check_branch
        %467 = sbr.rel (%p465) target = $region48
      $region47: #{tpu_custom_call.1} parent=5 // pred_region
        %s468 = ssub.s32 %s14, 2
        // Predicated region
        $region49: #{tpu_custom_call.1} parent=47 // pred_check
          %p469 = pneg %p153
        $region50: #{tpu_custom_call.1} parent=47 // pred_check_branch
          %471 = sbr.rel (%p469) target = $region52
        $region51: #{tpu_custom_call.1} parent=47 // pred_region
          %s472 = sand.u32 %s138, 1
          %s473 = scalar_lea.sflag [#allocation3], %s472
          %s474 = sand.u32 %s138, 1
          %s475 = smul.addr %s474, 64
          %s476 = scalar_lea.vmem [#allocation2], %s475
          %478 = dma.done %s473, 1024
        $region52: #{tpu_custom_call.1} parent=47 // pred_fallthru
          _
      $region48: #{tpu_custom_call.1} parent=5 // pred_fallthru
        _
    $region6: #{tpu_custom_call.1} parent=1 // loop_footer
      %s18 = sadd.s32 1, %s14
    $region7: #{tpu_custom_call.1} parent=1 // loop_footer_branch
      %13 = sbr.rel target = $region3
    $region8: #{tpu_custom_call.1} parent=1 // loop_exit
      _
    %479 = vsyncpa [#allocation3], 1
    %s480 = scalar_lea.sflag [#allocation3], 1
    %481 = vsyncpa %s480, 1

</llo_original>
